<compile_context>
chip_gen: v7x
topology: tpu7x:2x2x1
jax: 0.10.0
libtpu: 0.0.40
codegen_flags: <defaults>
</compile_context>

<pallas_src>
import functools

import jax
import jax.numpy as jnp
from jax.experimental import pallas as pl
from jax.experimental.pallas import tpu as pltpu


def _neck_kernel(x_ref, cls_ref, w1_ref, b1_ref, w2_ref, b2_ref, out_ref,
                 *, bt, n_tok, n_blk, compute_dtype):
    """One grid step == `bt` batch elements.

    x_ref   : (bt, n_blk, d1)   first-stage token rows (n_blk >= n_tok)
    cls_ref : (bt, 1, dh)       cls token of the last stage
    w1_ref  : (d1, o)           proj1 weight, (in, out) layout, compute dtype
    b1_ref  : (1, o)  f32
    w2_ref  : (dh, o)           proj2 weight, (in, out) layout, compute dtype
    b2_ref  : (1, o)  f32
    out_ref : (1+n_tok, bt*o) f32  -> `bt` lane columns of the fused output
    """
    d1 = x_ref.shape[-1]
    dh = cls_ref.shape[-1]

    # proj1: one fat MXU matmul over all bt*n_blk token rows of this step.
    x = x_ref[...].reshape(bt * n_blk, d1).astype(compute_dtype)
    y = jnp.dot(x, w1_ref[...],
                preferred_element_type=jnp.float32) + b1_ref[...]      # f32

    # proj2: one (bt, dh) @ (dh, o) matmul for every cls token of this step.
    c = cls_ref[...].reshape(bt, dh).astype(compute_dtype)
    cls_out = jnp.dot(c, w2_ref[...],
                      preferred_element_type=jnp.float32) + b2_ref[...]  # f32

    # Fused torch.cat((cls, x), dim=0) + seq/batch permute:
    # lane column i (lanes [i*o, (i+1)*o)) <- [cls_out[i] ; tokens of batch i].
    cols = []
    for i in range(bt):
        tok_i = y[i * n_blk:i * n_blk + n_tok, :]                      # (n_tok, o)
        cols.append(jnp.concatenate([cls_out[i:i + 1, :], tok_i], axis=0))
    out_ref[...] = jnp.concatenate(cols, axis=1)                       # one store


def _choose_batch_tile(B, n_blk, d1, dh, o, act_bytes, vmem_budget=24 << 20):
    """Largest divisor of B that fits the VMEM budget and keeps >=2 grid steps."""
    per_b = 2 * (n_blk * d1 * act_bytes        # x block (double buffered)
                 + dh * act_bytes              # cls block
                 + (1 + n_blk) * o * 4)        # f32 output block
    max_bt = max(1, int(vmem_budget // per_b))
    # Keep at least 2 "parallel" grid steps when B allows it, so both v7x
    # TensorCores get work; the extra step is noise on single-TC v5e/v6e.
    cap = min(max_bt, max(1, B // 2)) if B >= 2 else 1
    bt = 1
    for d in range(1, B + 1):
        if B % d == 0 and d <= cap:
            bt = d
    return bt


def neck_maxf_forward(xz_list, params, num_x, *, compute_dtype=jnp.bfloat16):
    """JAX/Pallas equivalent of NECK_MAXF.forward.

    Weights are stored as (in_features, out_features), i.e. the transpose of
    PyTorch's nn.Linear weight, so the kernel computes y = x @ W + b.
    """
    w1, b1, w2, b2 = params["w1"], params["b1"], params["w2"], params["b2"]

    L = len(xz_list)
    n_tok = num_x * 4 ** (L - 1)

    x_first = xz_list[0]            # (B, S0, d1)
    last = xz_list[-1]              # (B, SL, dh)
    B, S0, d1 = x_first.shape
    dh = last.shape[2]
    o = w1.shape[1]
    assert n_tok <= S0, (n_tok, S0)

    # The [:, :n_tok, :] token slice is read straight out of HBM by the input
    # BlockSpec.  If n_tok is not a legal sublane block (multiple of 8 or the
    # full seq dim), round the block up and discard the extra rows in-kernel
    # instead of paying a host-side slice pass over the largest input.
    if n_tok % 8 == 0 or n_tok == S0:
        n_blk = n_tok
    else:
        n_blk = min(S0, ((n_tok + 7) // 8) * 8)

    # Weights in the MXU compute dtype; biases stay f32 for the epilogue.
    w1c = w1.astype(compute_dtype)
    w2c = w2.astype(compute_dtype)
    b1_2d = b1.reshape(1, o).astype(jnp.float32)
    b2_2d = b2.reshape(1, o).astype(jnp.float32)

    # Tiny host slice of the single cls token: (B, 1, dh).
    cls_in = last[:, 0:1, :]

    act_bytes = jnp.dtype(x_first.dtype).itemsize
    cdt_bytes = jnp.dtype(compute_dtype).itemsize
    bt = _choose_batch_tile(B, n_blk, d1, dh, o, act_bytes)
    grid = (B // bt,)

    # Advisory cost hint for the XLA scheduler.
    flops = 2 * B * n_tok * d1 * o + 2 * B * dh * o
    bytes_accessed = (B * n_blk * d1 * act_bytes       # x tokens
                      + B * dh * act_bytes             # cls tokens
                      + (d1 + dh) * o * cdt_bytes      # weights
                      + 2 * o * 4                      # biases
                      + (1 + n_tok) * B * o * 4)       # output

    kernel = functools.partial(_neck_kernel, bt=bt, n_tok=n_tok, n_blk=n_blk,
                               compute_dtype=compute_dtype)

    # Output is written as (1+n_tok, B*o) so each per-step block
    # (1+n_tok, bt*o) is lane-dense; the reshape below is metadata only.
    out2d = pl.pallas_call(
        kernel,
        grid=grid,
        out_shape=jax.ShapeDtypeStruct((1 + n_tok, B * o), jnp.float32),
        in_specs=[
            pl.BlockSpec((bt, n_blk, d1), lambda g: (g, 0, 0)),   # x tokens
            pl.BlockSpec((bt, 1, dh), lambda g: (g, 0, 0)),       # cls tokens
            pl.BlockSpec((d1, o), lambda g: (0, 0)),              # w1 (resident)
            pl.BlockSpec((1, o), lambda g: (0, 0)),               # b1 (resident)
            pl.BlockSpec((dh, o), lambda g: (0, 0)),              # w2 (resident)
            pl.BlockSpec((1, o), lambda g: (0, 0)),               # b2 (resident)
        ],
        out_specs=pl.BlockSpec((1 + n_tok, bt * o), lambda g: (0, g)),
        compiler_params=pltpu.CompilerParams(
            dimension_semantics=("parallel",)),
        cost_estimate=pl.CostEstimate(
            flops=flops, transcendentals=0, bytes_accessed=bytes_accessed),
    )(x_first, cls_in, w1c, b1_2d, w2c, b2_2d)

    # (1+n_tok, B*o) -> (1+n_tok, B, o): row-major compatible, metadata only.
    return out2d.reshape(1 + n_tok, B, o)


if __name__ == "__main__":
    # Module config (small but consistent with NECK_MAXF.__init__);
    # feature dims chosen lane-dense (128).
    num_x = 2
    num_layers = 2
    stride = 2
    hidden_dim = 128
    output_dim = 128
    backbone_embed_dim = [128]

    B = 4
    L = 2                                  # len(xz_list)
    n_tok = num_x * 4 ** (L - 1)           # 8
    S0 = 16                                # first-stage seq len (>= n_tok)
    SL = 10                                # last-stage seq len (cls at index 0)

    key = jax.random.PRNGKey(0)
    ks = jax.random.split(key, 6)

    xz_list = [
        jax.random.normal(ks[0], (B, S0, backbone_embed_dim[0]), jnp.float32),
        jax.random.normal(ks[1], (B, SL, hidden_dim), jnp.float32),
    ]

    # Deterministic parameter init (weights stored as (in, out) == W.T).
    params = {
        "w1": 0.02 * jax.random.normal(
            ks[2], (backbone_embed_dim[0], output_dim), jnp.float32),
        "b1": 0.02 * jax.random.normal(ks[3], (output_dim,), jnp.float32),
        "w2": 0.02 * jax.random.normal(
            ks[4], (hidden_dim, output_dim), jnp.float32),
        "b2": 0.02 * jax.random.normal(ks[5], (output_dim,), jnp.float32),
    }

    out = neck_maxf_forward(xz_list, params, num_x)
    out = jax.block_until_ready(out)

    # Pure-JAX reference of the PyTorch forward, using the same bf16 operand /
    # f32 accumulation recipe as the kernel.
    cdt = jnp.bfloat16
    cls_p = jnp.transpose(xz_list[-1][:, 0:1, :], (1, 0, 2))     # (1, B, dh)
    x_p = jnp.transpose(xz_list[0][:, 0:n_tok, :], (1, 0, 2))    # (N, B, d1)
    ref_cls = jnp.einsum("sbd,do->sbo", cls_p.astype(cdt),
                         params["w2"].astype(cdt),
                         preferred_element_type=jnp.float32) + params["b2"]
    ref_x = jnp.einsum("sbd,do->sbo", x_p.astype(cdt),
                       params["w1"].astype(cdt),
                       preferred_element_type=jnp.float32) + params["b1"]
    ref = jnp.concatenate([ref_cls, ref_x], axis=0)

    # Full-f32 reference (PyTorch-equivalent math) with a looser tolerance.
    ref_cls_f32 = jnp.einsum("sbd,do->sbo", cls_p, params["w2"]) + params["b2"]
    ref_x_f32 = jnp.einsum("sbd,do->sbo", x_p, params["w1"]) + params["b1"]
    ref_f32 = jnp.concatenate([ref_cls_f32, ref_x_f32], axis=0)

    assert out.shape == (1 + n_tok, B, output_dim), out.shape
    max_err = float(jnp.max(jnp.abs(out - ref)))
    assert max_err < 2e-3, max_err
    max_err_f32 = float(jnp.max(jnp.abs(out - ref_f32)))
    assert max_err_f32 < 3e-2, max_err_f32
    print("KERNEL_OK")
</pallas_src>

<mosaic_0001>
module attributes {stable_mosaic.version = 11 : i64} {
  func.func @_neck_kernel(%arg0: i32, %arg1: memref<2x8x128xf32, #tpu.memory_space<vmem>>, %arg2: memref<2x1x128xf32, #tpu.memory_space<vmem>>, %arg3: memref<128x128xbf16, #tpu.memory_space<vmem>>, %arg4: memref<1x128xf32, #tpu.memory_space<vmem>>, %arg5: memref<128x128xbf16, #tpu.memory_space<vmem>>, %arg6: memref<1x128xf32, #tpu.memory_space<vmem>>, %arg7: memref<9x256xf32, #tpu.memory_space<vmem>>) attributes {dimension_semantics = [#tpu.dimension_semantics<parallel>], iteration_bounds = array<i64: 2>, scalar_prefetch = 0 : i64, scratch_operands = 0 : i64, tpu.core_type = #tpu.core_type<tc>, window_params = [{transform_indices = @transform_0, window_bounds = array<i64: 2, 8, 128>}, {transform_indices = @transform_1, window_bounds = array<i64: 2, 1, 128>}, {pipeline_mode = #tpu.pipeline_mode<synchronous>, transform_indices = @transform_2, window_bounds = array<i64: 128, 128>}, {pipeline_mode = #tpu.pipeline_mode<synchronous>, transform_indices = @transform_3, window_bounds = array<i64: 1, 128>}, {pipeline_mode = #tpu.pipeline_mode<synchronous>, transform_indices = @transform_4, window_bounds = array<i64: 128, 128>}, {pipeline_mode = #tpu.pipeline_mode<synchronous>, transform_indices = @transform_5, window_bounds = array<i64: 1, 128>}, {transform_indices = @transform_6, window_bounds = array<i64: 9, 256>}]} {
    %c0 = arith.constant 0 : index
    %c0_0 = arith.constant 0 : index
    %c0_1 = arith.constant 0 : index
    %0 = vector.load %arg1[%c0, %c0_0, %c0_1] : memref<2x8x128xf32, #tpu.memory_space<vmem>>, vector<2x8x128xf32>
    %1 = vector.shape_cast %0 : vector<2x8x128xf32> to vector<16x128xf32>
    %2 = arith.truncf %1 : vector<16x128xf32> to vector<16x128xbf16>
    %c0_2 = arith.constant 0 : index
    %c0_3 = arith.constant 0 : index
    %3 = vector.load %arg3[%c0_2, %c0_3] : memref<128x128xbf16, #tpu.memory_space<vmem>>, vector<128x128xbf16>
    %cst = arith.constant dense<0.000000e+00> : vector<16x128xf32>
    %4 = tpu.matmul %2, %3, %cst {dimension_numbers = #tpu.dot_dimension_numbers<[1], [0], [0], [1], [0, 0, 1, 1], [], []>} : vector<16x128xbf16>, vector<128x128xbf16>, vector<16x128xf32> -> vector<16x128xf32>
    %c0_4 = arith.constant 0 : index
    %c0_5 = arith.constant 0 : index
    %5 = vector.load %arg4[%c0_4, %c0_5] : memref<1x128xf32, #tpu.memory_space<vmem>>, vector<1x128xf32>
    %6 = vector.broadcast %5 : vector<1x128xf32> to vector<16x128xf32>
    %7 = arith.addf %4, %6 : vector<16x128xf32>
    %c0_6 = arith.constant 0 : index
    %c0_7 = arith.constant 0 : index
    %c0_8 = arith.constant 0 : index
    %8 = vector.load %arg2[%c0_6, %c0_7, %c0_8] : memref<2x1x128xf32, #tpu.memory_space<vmem>>, vector<2x1x128xf32>
    %9 = vector.shape_cast %8 : vector<2x1x128xf32> to vector<2x128xf32>
    %10 = arith.truncf %9 : vector<2x128xf32> to vector<2x128xbf16>
    %c0_9 = arith.constant 0 : index
    %c0_10 = arith.constant 0 : index
    %11 = vector.load %arg5[%c0_9, %c0_10] : memref<128x128xbf16, #tpu.memory_space<vmem>>, vector<128x128xbf16>
    %cst_11 = arith.constant dense<0.000000e+00> : vector<2x128xf32>
    %12 = tpu.matmul %10, %11, %cst_11 {dimension_numbers = #tpu.dot_dimension_numbers<[1], [0], [0], [1], [0, 0, 1, 1], [], []>} : vector<2x128xbf16>, vector<128x128xbf16>, vector<2x128xf32> -> vector<2x128xf32>
    %c0_12 = arith.constant 0 : index
    %c0_13 = arith.constant 0 : index
    %13 = vector.load %arg6[%c0_12, %c0_13] : memref<1x128xf32, #tpu.memory_space<vmem>>, vector<1x128xf32>
    %14 = vector.broadcast %13 : vector<1x128xf32> to vector<2x128xf32>
    %15 = arith.addf %12, %14 : vector<2x128xf32>
    %16 = vector.extract_strided_slice %7 {offsets = [0, 0], sizes = [8, 128], strides = [1, 1]} : vector<16x128xf32> to vector<8x128xf32>
    %17 = vector.extract_strided_slice %15 {offsets = [0, 0], sizes = [1, 128], strides = [1, 1]} : vector<2x128xf32> to vector<1x128xf32>
    %18 = tpu.concatenate %17, %16 in 0 : vector<1x128xf32>, vector<8x128xf32> -> vector<9x128xf32>
    %19 = vector.extract_strided_slice %7 {offsets = [8, 0], sizes = [8, 128], strides = [1, 1]} : vector<16x128xf32> to vector<8x128xf32>
    %20 = vector.extract_strided_slice %15 {offsets = [1, 0], sizes = [1, 128], strides = [1, 1]} : vector<2x128xf32> to vector<1x128xf32>
    %21 = tpu.concatenate %20, %19 in 0 : vector<1x128xf32>, vector<8x128xf32> -> vector<9x128xf32>
    %22 = tpu.concatenate %18, %21 in 1 : vector<9x128xf32>, vector<9x128xf32> -> vector<9x256xf32>
    %c0_14 = arith.constant 0 : index
    %c0_15 = arith.constant 0 : index
    %23 = vector.load %arg7[%c0_14, %c0_15] : memref<9x256xf32, #tpu.memory_space<vmem>>, vector<9x256xf32>
    tpu.vector_store %arg7[%c0_14, %c0_15], %22 {strides = array<i32>} : memref<9x256xf32, #tpu.memory_space<vmem>>, vector<9x256xf32>,
    return
  }
  func.func @transform_0(%arg0: i32) -> (i32, i32, i32) {
    %c0_i32 = arith.constant 0 : i32
    %c0_i32_0 = arith.constant 0 : i32
    %c0_i32_1 = arith.constant 0 : i32
    return %arg0, %c0_i32, %c0_i32_0 : i32, i32, i32
  }
  func.func @transform_1(%arg0: i32) -> (i32, i32, i32) {
    %c0_i32 = arith.constant 0 : i32
    %c0_i32_0 = arith.constant 0 : i32
    %c0_i32_1 = arith.constant 0 : i32
    return %arg0, %c0_i32, %c0_i32_0 : i32, i32, i32
  }
  func.func @transform_2(%arg0: i32) -> (i32, i32) {
    %c0_i32 = arith.constant 0 : i32
    %c0_i32_0 = arith.constant 0 : i32
    %c0_i32_1 = arith.constant 0 : i32
    return %c0_i32, %c0_i32_0 : i32, i32
  }
  func.func @transform_3(%arg0: i32) -> (i32, i32) {
    %c0_i32 = arith.constant 0 : i32
    %c0_i32_0 = arith.constant 0 : i32
    %c0_i32_1 = arith.constant 0 : i32
    return %c0_i32, %c0_i32_0 : i32, i32
  }
  func.func @transform_4(%arg0: i32) -> (i32, i32) {
    %c0_i32 = arith.constant 0 : i32
    %c0_i32_0 = arith.constant 0 : i32
    %c0_i32_1 = arith.constant 0 : i32
    return %c0_i32, %c0_i32_0 : i32, i32
  }
  func.func @transform_5(%arg0: i32) -> (i32, i32) {
    %c0_i32 = arith.constant 0 : i32
    %c0_i32_0 = arith.constant 0 : i32
    %c0_i32_1 = arith.constant 0 : i32
    return %c0_i32, %c0_i32_0 : i32, i32
  }
  func.func @transform_6(%arg0: i32) -> (i32, i32) {
    %c0_i32 = arith.constant 0 : i32
    %c0_i32_0 = arith.constant 0 : i32
    return %c0_i32, %arg0 : i32, i32
  }
}

</mosaic_0001>

<llo_original>
// kernel: tpu_custom_call.1
$region0: #{tpu_custom_call.1}
  #allocation0 [shape = 'u32[]', space=smem, size = 0x4, offset = 0x4, fixed_abs, tag = 'smem constant byte address 0x4 - core index']
  #allocation1 [shape = 'u32[144,128]{1,0:T(1,128)}', space=vmem, size = 0x12000, scoped, tag = 'internal scratch']
  %s0 = inlined_call_operand.hbm [shape: f32[4,16,128], index: 0, kind: input, shape index: {}]
  %s1 = inlined_call_operand.hbm [shape: f32[4,1,128], index: 1, kind: input, shape index: {}]
  %s2 = inlined_call_operand.hbm [shape: bf16[128,128], index: 2, kind: input, shape index: {}]
  %s3 = inlined_call_operand.vmem [shape: f32[1,128], index: 3, kind: input, shape index: {}]
  %s4 = inlined_call_operand.hbm [shape: bf16[128,128], index: 4, kind: input, shape index: {}]
  %s5 = inlined_call_operand.vmem [shape: f32[1,128], index: 5, kind: input, shape index: {}]
  %s6 = inlined_call_operand.hbm [shape: f32[9,512], index: 6, kind: output, shape index: {}]
  %s7 = sld [smem:[#allocation0]]
  $region73: #{tpu_custom_call.1} parent=0
    _
  %s9 = ssub.s32 1, %s7
  %s10 = scalar_select 0, %s9, %s7
  $region1: #{tpu_custom_call.1} parent=0
    #allocation2 [shape = 'u8[16384]{0}', space=vmem, size = 0x4000, scoped, tag = 'input window, operand 0']
    #allocation3 [shape = 's32[2]{0}', space=sflag, size = 0x8, scoped, tag = 'scoped memory for tpu_custom_call.1']
    #allocation4 [shape = 's32[2]{0}', space=sflag, size = 0x8, scoped, tag = 'scoped memory for tpu_custom_call.1']
    #allocation5 [shape = 'u8[2048]{0}', space=vmem, size = 0x800, scoped, tag = 'input window, operand 1']
    #allocation6 [shape = 's32[2]{0}', space=sflag, size = 0x8, scoped, tag = 'scoped memory for tpu_custom_call.1']
    #allocation7 [shape = 'u8[32768]{0}', space=vmem, size = 0x8000, scoped, tag = 'input window, operand 2, single buffered']
    #allocation8 [shape = 'u8[32768]{0}', space=vmem, size = 0x8000, scoped, tag = 'input window, operand 4, single buffered']
    #allocation9 [shape = 's32[1]{0}', space=sflag, size = 0x4, scoped, tag = 'scoped memory for tpu_custom_call.1']
    #allocation10 [shape = 'u8[32768]{0}', space=vmem, size = 0x8000, scoped, tag = 'output window, operand 0']
    %11 = vsyncpa [#allocation3], 0
    %s12 = scalar_lea.sflag [#allocation3], 1
    %13 = vsyncpa %s12, 0
    %14 = vsyncpa [#allocation6], 0
    %s15 = scalar_lea.sflag [#allocation6], 1
    %16 = vsyncpa %s15, 0
    %17 = vsyncpa [#allocation9], 0
    %18 = vsyncpa [#allocation4], 0
    %s19 = scalar_lea.sflag [#allocation4], 1
    %20 = vsyncpa %s19, 0
    loop: start=0, step=1, limit=4
    $region2: #{tpu_custom_call.1} parent=1 // loop_pre_header
      _
    $region3: #{tpu_custom_call.1} parent=1 // loop_header
      %s22 = sphi 0, %s26
      %p23 = scmp.ge.s32.totalorder %s22, 4
      %s32 = sphi 0, %s34
      %s35 = sphi 0, %s32
      %s36 = sphi 0, %s35
      %s52 = sphi 0, %s36
      %s58 = sphi 0, %s60
      %s61 = sphi 0, %s58
      %s62 = sphi 0, %s61
      %s78 = sphi 0, %s62
      %s82 = sphi 0, %s82
      %s84 = sphi 0, %s82
      %s85 = sphi 0, %s84
      %s99 = sphi 0, %s85
      %s103 = sphi 0, %s103
      %s105 = sphi 0, %s103
      %s106 = sphi 0, %s105
      %s120 = sphi 0, %s106
      %s124 = sphi 0, %s124
      %s126 = sphi 0, %s124
      %s127 = sphi 0, %s126
      %s141 = sphi 0, %s127
      %s145 = sphi 0, %s145
      %s147 = sphi 0, %s145
      %s148 = sphi 0, %s147
      %s162 = sphi 0, %s148
      %s168 = sphi 0, %s170
      %s171 = sphi 0, %s168
      %s172 = sphi 0, %s171
      %s188 = sphi 0, %s172
    $region4: #{tpu_custom_call.1} parent=1 // loop_header_branch
      %25 = sbr.rel (%p23) target = $region8
    $region5: #{tpu_custom_call.1} parent=1 // loop_body
      %s27 = ssub.s32 %s22, 1
      %s28 = ssub.s32 %s22, 2
      %s29 = sadd.s32 %s22, 1
      %s30 = ssub.s32 %s22, %s29
      %p31 = scmp.eq.s32.totalorder %s30, 0
      %s33 = sadd.s32 %s32, 1
      %s34 = scalar_select %p31, %s32, %s33
      %p37 = pneg %p31
      %p38 = scmp.eq.s32.totalorder %s22, 1
      %p39 = por %p37, %p38
      %p40 = scmp.ne.s32.totalorder %s32, %s35
      %p41 = scmp.eq.s32.totalorder %s22, 0
      %p42 = por %p40, %p41
      %p43 = scmp.ne.s32.totalorder %s32, %s35
      %p44 = scmp.eq.s32.totalorder %s27, 1
      %p45 = por %p43, %p44
      %p46 = scmp.ne.s32.totalorder %s35, %s36
      %p47 = scmp.eq.s32.totalorder %s27, 0
      %p48 = por %p46, %p47
      %p49 = scmp.ne.s32.totalorder %s35, %s36
      %p50 = scmp.eq.s32.totalorder %s28, 1
      %p51 = por %p49, %p50
      %p53 = scmp.ne.s32.totalorder %s36, %s52
      %p54 = scmp.eq.s32.totalorder %s28, 0
      %p55 = por %p53, %p54
      %s56 = ssub.s32 %s22, %s29
      %p57 = scmp.eq.s32.totalorder %s56, 0
      %s59 = sadd.s32 %s58, 1
      %s60 = scalar_select %p57, %s58, %s59
      %p63 = pneg %p57
      %p64 = scmp.eq.s32.totalorder %s22, 1
      %p65 = por %p63, %p64
      %p66 = scmp.ne.s32.totalorder %s58, %s61
      %p67 = scmp.eq.s32.totalorder %s22, 0
      %p68 = por %p66, %p67
      %p69 = scmp.ne.s32.totalorder %s58, %s61
      %p70 = scmp.eq.s32.totalorder %s27, 1
      %p71 = por %p69, %p70
      %p72 = scmp.ne.s32.totalorder %s61, %s62
      %p73 = scmp.eq.s32.totalorder %s27, 0
      %p74 = por %p72, %p73
      %p75 = scmp.ne.s32.totalorder %s61, %s62
      %p76 = scmp.eq.s32.totalorder %s28, 1
      %p77 = por %p75, %p76
      %p79 = scmp.ne.s32.totalorder %s62, %s78
      %p80 = scmp.eq.s32.totalorder %s28, 0
      %p81 = por %p79, %p80
      %s83 = sadd.s32 %s82, 1
      %p86 = scmp.eq.s32.totalorder %s22, 1
      %p87 = scmp.ne.s32.totalorder %s82, %s84
      %p88 = scmp.eq.s32.totalorder %s22, 0
      %p89 = por %p87, %p88
      %p90 = scmp.ne.s32.totalorder %s82, %s84
      %p91 = scmp.eq.s32.totalorder %s27, 1
      %p92 = por %p90, %p91
      %p93 = scmp.ne.s32.totalorder %s84, %s85
      %p94 = scmp.eq.s32.totalorder %s27, 0
      %p95 = por %p93, %p94
      %p96 = scmp.ne.s32.totalorder %s84, %s85
      %p97 = scmp.eq.s32.totalorder %s28, 1
      %p98 = por %p96, %p97
      %p100 = scmp.ne.s32.totalorder %s85, %s99
      %p101 = scmp.eq.s32.totalorder %s28, 0
      %p102 = por %p100, %p101
      %s104 = sadd.s32 %s103, 1
      %p107 = scmp.eq.s32.totalorder %s22, 1
      %p108 = scmp.ne.s32.totalorder %s103, %s105
      %p109 = scmp.eq.s32.totalorder %s22, 0
      %p110 = por %p108, %p109
      %p111 = scmp.ne.s32.totalorder %s103, %s105
      %p112 = scmp.eq.s32.totalorder %s27, 1
      %p113 = por %p111, %p112
      %p114 = scmp.ne.s32.totalorder %s105, %s106
      %p115 = scmp.eq.s32.totalorder %s27, 0
      %p116 = por %p114, %p115
      %p117 = scmp.ne.s32.totalorder %s105, %s106
      %p118 = scmp.eq.s32.totalorder %s28, 1
      %p119 = por %p117, %p118
      %p121 = scmp.ne.s32.totalorder %s106, %s120
      %p122 = scmp.eq.s32.totalorder %s28, 0
      %p123 = por %p121, %p122
      %s125 = sadd.s32 %s124, 1
      %p128 = scmp.eq.s32.totalorder %s22, 1
      %p129 = scmp.ne.s32.totalorder %s124, %s126
      %p130 = scmp.eq.s32.totalorder %s22, 0
      %p131 = por %p129, %p130
      %p132 = scmp.ne.s32.totalorder %s124, %s126
      %p133 = scmp.eq.s32.totalorder %s27, 1
      %p134 = por %p132, %p133
      %p135 = scmp.ne.s32.totalorder %s126, %s127
      %p136 = scmp.eq.s32.totalorder %s27, 0
      %p137 = por %p135, %p136
      %p138 = scmp.ne.s32.totalorder %s126, %s127
      %p139 = scmp.eq.s32.totalorder %s28, 1
      %p140 = por %p138, %p139
      %p142 = scmp.ne.s32.totalorder %s127, %s141
      %p143 = scmp.eq.s32.totalorder %s28, 0
      %p144 = por %p142, %p143
      %s146 = sadd.s32 %s145, 1
      %p149 = scmp.eq.s32.totalorder %s22, 1
      %p150 = scmp.ne.s32.totalorder %s145, %s147
      %p151 = scmp.eq.s32.totalorder %s22, 0
      %p152 = por %p150, %p151
      %p153 = scmp.ne.s32.totalorder %s145, %s147
      %p154 = scmp.eq.s32.totalorder %s27, 1
      %p155 = por %p153, %p154
      %p156 = scmp.ne.s32.totalorder %s147, %s148
      %p157 = scmp.eq.s32.totalorder %s27, 0
      %p158 = por %p156, %p157
      %p159 = scmp.ne.s32.totalorder %s147, %s148
      %p160 = scmp.eq.s32.totalorder %s28, 1
      %p161 = por %p159, %p160
      %p163 = scmp.ne.s32.totalorder %s148, %s162
      %p164 = scmp.eq.s32.totalorder %s28, 0
      %p165 = por %p163, %p164
      %s166 = ssub.s32 %s22, %s29
      %p167 = scmp.eq.s32.totalorder %s166, 0
      %s169 = sadd.s32 %s168, 1
      %s170 = scalar_select %p167, %s168, %s169
      %p173 = pneg %p167
      %p174 = scmp.eq.s32.totalorder %s22, 1
      %p175 = por %p173, %p174
      %p176 = scmp.ne.s32.totalorder %s168, %s171
      %p177 = scmp.eq.s32.totalorder %s22, 0
      %p178 = por %p176, %p177
      %p179 = scmp.ne.s32.totalorder %s168, %s171
      %p180 = scmp.eq.s32.totalorder %s27, 1
      %p181 = por %p179, %p180
      %p182 = scmp.ne.s32.totalorder %s171, %s172
      %p183 = scmp.eq.s32.totalorder %s27, 0
      %p184 = por %p182, %p183
      %p185 = scmp.ne.s32.totalorder %s171, %s172
      %p186 = scmp.eq.s32.totalorder %s28, 1
      %p187 = por %p185, %p186
      %p189 = scmp.ne.s32.totalorder %s172, %s188
      %p190 = scmp.eq.s32.totalorder %s28, 0
      %p191 = por %p189, %p190
      %p192 = scmp.le.s32.totalorder 1, %s22
      %p193 = scmp.lt.s32.totalorder %s22, 3
      %p194 = pnand %p192, %p193
      %p195 = pneg %p194
      // Predicated region
      $region9: #{tpu_custom_call.1} parent=5 // pred_check
        _
      $region10: #{tpu_custom_call.1} parent=5 // pred_check_branch
        %197 = sbr.rel (%p194) target = $region12
      $region11: #{tpu_custom_call.1} parent=5 // pred_region
        %s198 = ssub.s32 %s22, 1
        // Predicated region
        $region13: #{tpu_custom_call.1} parent=11 // pred_check
          %p199 = pneg %p95
        $region14: #{tpu_custom_call.1} parent=11 // pred_check_branch
          %201 = sbr.rel (%p199) target = $region16
        $region15: #{tpu_custom_call.1} parent=11 // pred_region
          %s203 = ssub.s32 1024, 1024
          %204 = vsyncadd [#allocation6], %s203
          %s205 = sshll.u32 [#allocation7], 4
          %s206 = int_to_ptr.vmem [resolvable:$true] %s205
          %211 = dma.hbm_to_vmem [thread:$0]  %s2, 1024, %s206, [#allocation6], 64, 64, 4
        $region16: #{tpu_custom_call.1} parent=11 // pred_fallthru
          _
        // Predicated region
        $region17: #{tpu_custom_call.1} parent=11 // pred_check
          %p212 = pneg %p116
        $region18: #{tpu_custom_call.1} parent=11 // pred_check_branch
          %214 = sbr.rel (%p212) target = $region20
        $region19: #{tpu_custom_call.1} parent=11 // pred_region
          _
        $region20: #{tpu_custom_call.1} parent=11 // pred_fallthru
          _
        // Predicated region
        $region21: #{tpu_custom_call.1} parent=11 // pred_check
          %p215 = pneg %p137
        $region22: #{tpu_custom_call.1} parent=11 // pred_check_branch
          %217 = sbr.rel (%p215) target = $region24
        $region23: #{tpu_custom_call.1} parent=11 // pred_region
          %s219 = ssub.s32 1024, 1024
          %220 = vsyncadd [#allocation9], %s219
          %s221 = sshll.u32 [#allocation8], 4
          %s222 = int_to_ptr.vmem [resolvable:$true] %s221
          %227 = dma.hbm_to_vmem [thread:$0]  %s4, 1024, %s222, [#allocation9], 64, 64, 4
        $region24: #{tpu_custom_call.1} parent=11 // pred_fallthru
          _
        // Predicated region
        $region25: #{tpu_custom_call.1} parent=11 // pred_check
          %p228 = pneg %p158
        $region26: #{tpu_custom_call.1} parent=11 // pred_check_branch
          %230 = sbr.rel (%p228) target = $region28
        $region27: #{tpu_custom_call.1} parent=11 // pred_region
          _
        $region28: #{tpu_custom_call.1} parent=11 // pred_fallthru
          _
      $region12: #{tpu_custom_call.1} parent=5 // pred_fallthru
        _
      %p231 = scmp.lt.s32.totalorder %s22, 2
      // Predicated region
      $region29: #{tpu_custom_call.1} parent=5 // pred_check
        %p232 = pneg %p231
      $region30: #{tpu_custom_call.1} parent=5 // pred_check_branch
        %234 = sbr.rel (%p232) target = $region32
      $region31: #{tpu_custom_call.1} parent=5 // pred_region
        // Predicated region
        $region33: #{tpu_custom_call.1} parent=31 // pred_check
          %p235 = pneg %p42
        $region34: #{tpu_custom_call.1} parent=31 // pred_check_branch
          %237 = sbr.rel (%p235) target = $region36
        $region35: #{tpu_custom_call.1} parent=31 // pred_region
          %s238 = sand.u32 %s32, 1
          %s239 = scalar_lea.sflag [#allocation3], %s238
          %s240 = sand.u32 %s32, 1
          %s241 = smul.addr %s240, 16
          %s242 = scalar_lea.vmem [#allocation2], %s241
          %s243 = smul.u32 2, %s22
          %s245 = ssub.s32 256, 256
          %246 = vsyncadd %s239, %s245
          %s247 = smul.addr %s243, 2
          %s248 = smul.addr %s247, 128
          %s249 = scalar_lea.hbm %s0, %s248
          %s250 = sshll.u32 %s242, 4
          %s251 = int_to_ptr.vmem [resolvable:$true] %s250
          %256 = dma.hbm_to_vmem [thread:$0]  %s249, 256, %s251, %s239, 256, 128, 8
        $region36: #{tpu_custom_call.1} parent=31 // pred_fallthru
          _
        // Predicated region
        $region37: #{tpu_custom_call.1} parent=31 // pred_check
          %p257 = pneg %p68
        $region38: #{tpu_custom_call.1} parent=31 // pred_check_branch
          %259 = sbr.rel (%p257) target = $region40
        $region39: #{tpu_custom_call.1} parent=31 // pred_region
          %s260 = sand.u32 %s22, 1
          %s261 = scalar_lea.sflag [#allocation6], %s260
          %s262 = sand.u32 %s58, 1
          %s263 = smul.addr %s262, 2
          %s264 = scalar_lea.vmem [#allocation5], %s263
          %s265 = smul.u32 2, %s22
          %s267 = ssub.s32 32, 32
          %268 = vsyncadd %s261, %s267
          %s269 = smul.addr %s265, 16
          %s270 = scalar_lea.hbm %s1, %s269
          %s271 = sshll.u32 %s264, 4
          %s272 = int_to_ptr.vmem [resolvable:$true] %s271
          %277 = dma.hbm_to_vmem [thread:$0]  %s270, 32, %s272, %s261, 16, 16, 1
        $region40: #{tpu_custom_call.1} parent=31 // pred_fallthru
          _
      $region32: #{tpu_custom_call.1} parent=5 // pred_fallthru
        _
      %p278 = scmp.le.s32.totalorder 1, %s22
      %p279 = scmp.lt.s32.totalorder %s22, 3
      %p280 = pnand %p278, %p279
      %p281 = pneg %p280
      // Predicated region
      $region41: #{tpu_custom_call.1} parent=5 // pred_check
        _
      $region42: #{tpu_custom_call.1} parent=5 // pred_check_branch
        %283 = sbr.rel (%p280) target = $region44
      $region43: #{tpu_custom_call.1} parent=5 // pred_region
        %s284 = ssub.s32 %s22, 1
        %s285 = sand.u32 %s35, 1
        %s286 = scalar_lea.sflag [#allocation3], %s285
        %s287 = sand.u32 %s35, 1
        %s288 = smul.addr %s287, 16
        %s289 = scalar_lea.vmem [#allocation2], %s288
        // Predicated region
        $region45: #{tpu_custom_call.1} parent=43 // pred_check
          %p290 = pneg %p48
        $region46: #{tpu_custom_call.1} parent=43 // pred_check_branch
          %292 = sbr.rel (%p290) target = $region48
        $region47: #{tpu_custom_call.1} parent=43 // pred_region
          %293 = dma.done %s286, 256
        $region48: #{tpu_custom_call.1} parent=43 // pred_fallthru
          _
        %s294 = sand.u32 %s27, 1
        %s295 = scalar_lea.sflag [#allocation6], %s294
        %s296 = sand.u32 %s61, 1
        %s297 = smul.addr %s296, 2
        %s298 = scalar_lea.vmem [#allocation5], %s297
        // Predicated region
        $region49: #{tpu_custom_call.1} parent=43 // pred_check
          %p299 = pneg %p74
        $region50: #{tpu_custom_call.1} parent=43 // pred_check_branch
          %301 = sbr.rel (%p299) target = $region52
        $region51: #{tpu_custom_call.1} parent=43 // pred_region
          %302 = dma.done %s295, 32
        $region52: #{tpu_custom_call.1} parent=43 // pred_fallthru
          _
        // Predicated region
        $region53: #{tpu_custom_call.1} parent=43 // pred_check
          %p303 = pneg %p95
        $region54: #{tpu_custom_call.1} parent=43 // pred_check_branch
          %305 = sbr.rel (%p303) target = $region56
        $region55: #{tpu_custom_call.1} parent=43 // pred_region
          %306 = dma.done [#allocation6], 1024
        $region56: #{tpu_custom_call.1} parent=43 // pred_fallthru
          _
        // Predicated region
        $region57: #{tpu_custom_call.1} parent=43 // pred_check
          %p307 = pneg %p137
        $region58: #{tpu_custom_call.1} parent=43 // pred_check_branch
          %309 = sbr.rel (%p307) target = $region60
        $region59: #{tpu_custom_call.1} parent=43 // pred_region
          %310 = dma.done [#allocation9], 1024
        $region60: #{tpu_custom_call.1} parent=43 // pred_fallthru
          _
        %s311 = sand.u32 %s35, 1
        %s312 = scalar_lea.sflag [#allocation3], %s311
        %s313 = sand.u32 %s35, 1
        %s314 = smul.addr %s313, 16
        %s315 = scalar_lea.vmem [#allocation2], %s314
        %p316 = pneg %p48
        %p317 = pneg %p45
        %s318 = sand.u32 %s27, 1
        %s319 = scalar_lea.sflag [#allocation6], %s318
        %s320 = sand.u32 %s61, 1
        %s321 = smul.addr %s320, 2
        %s322 = scalar_lea.vmem [#allocation5], %s321
        %p323 = pneg %p74
        %p324 = pneg %p71
        %p325 = pneg %p95
        %p326 = pneg %p92
        %p327 = pneg %p116
        %p328 = pneg %p113
        %p329 = pneg %p137
        %p330 = pneg %p134
        %p331 = pneg %p158
        %p332 = pneg %p155
        %p333 = pneg %p184
        %p334 = pneg %p181
        %s335 = sand.u32 %s171, 1
        %s336 = scalar_lea.sflag [#allocation4], %s335
        %s337 = sand.u32 %s171, 1
        %s338 = smul.addr %s337, 32
        %s339 = scalar_lea.vmem [#allocation10], %s338
        %s340 = smul.u32 2, %s27
        %s341 = smul.u32 2, %s27
        %s342 = smul.u32 2, %s27
        %v344 = vld [vmem:[%s289] sm:$0xff]
        %v345 = vld [vmem:[%s289 + $0x8] sm:$0xff]
        %v346 = vpack.c.bf16 %v345, %v344
        %v347 = vld [vmem:[#allocation7] sm:$0xf]
        %v348 = vld [vmem:[#allocation7 + $0x4] sm:$0xf]
        %v349 = vld [vmem:[#allocation7 + $0x8] sm:$0xf]
        %v350 = vld [vmem:[#allocation7 + $0xc] sm:$0xf]
        %v351 = vld [vmem:[#allocation7 + $0x10] sm:$0xf]
        %v352 = vld [vmem:[#allocation7 + $0x14] sm:$0xf]
        %v353 = vld [vmem:[#allocation7 + $0x18] sm:$0xf]
        %v354 = vld [vmem:[#allocation7 + $0x1c] sm:$0xf]
        %v355 = vld [vmem:[#allocation7 + $0x20] sm:$0xf]
        %v356 = vld [vmem:[#allocation7 + $0x24] sm:$0xf]
        %v357 = vld [vmem:[#allocation7 + $0x28] sm:$0xf]
        %v358 = vld [vmem:[#allocation7 + $0x2c] sm:$0xf]
        %v359 = vld [vmem:[#allocation7 + $0x30] sm:$0xf]
        %v360 = vld [vmem:[#allocation7 + $0x34] sm:$0xf]
        %v361 = vld [vmem:[#allocation7 + $0x38] sm:$0xf]
        %v362 = vld [vmem:[#allocation7 + $0x3c] sm:$0xf]
        %v363 = vld [vmem:[%s3] sm:$0x1]
        %v365 = vlaneseq
        %v366 = vshrl.u32 %v365, 7
        %v367 = vsub.s32 0, %v366
        %v368 = vrot.slane %v363, %v367
        %v386 = vunpack.c.l.b16 %v347
        %v387 = vunpack.c.l.b16 %v348
        %v388 = vunpack.c.l.b16 %v349
        %v389 = vunpack.c.l.b16 %v350
        %v390 = vunpack.c.l.b16 %v351
        %v391 = vunpack.c.l.b16 %v352
        %v392 = vunpack.c.l.b16 %v353
        %v393 = vunpack.c.l.b16 %v354
        %v394 = vunpack.c.l.b16 %v355
        %v395 = vunpack.c.l.b16 %v356
        %v396 = vunpack.c.l.b16 %v357
        %v397 = vunpack.c.l.b16 %v358
        %v398 = vunpack.c.l.b16 %v359
        %v399 = vunpack.c.l.b16 %v360
        %v400 = vunpack.c.l.b16 %v361
        %v401 = vunpack.c.l.b16 %v362
        %v402 = vpack.c.b16 %v387, %v386
        %v403 = vpack.c.b16 %v389, %v388
        %v404 = vpack.c.b16 %v391, %v390
        %v405 = vpack.c.b16 %v393, %v392
        %v406 = vpack.c.b16 %v395, %v394
        %v407 = vpack.c.b16 %v397, %v396
        %v408 = vpack.c.b16 %v399, %v398
        %v409 = vpack.c.b16 %v401, %v400
        %418 = vmatprep.subr.bf16.mxu0 0
        %419 = vmatpush1.bf16.msra.mxu0 %v402
        %420 = vmatprep.subr.bf16.mxu0 0
        %421 = vmatpush1.bf16.msra.mxu0 %v403
        %422 = vmatprep.subr.bf16.mxu0 0
        %423 = vmatpush1.bf16.msra.mxu0 %v404
        %424 = vmatprep.subr.bf16.mxu0 0
        %425 = vmatpush1.bf16.msra.mxu0 %v405
        %426 = vmatprep.subr.bf16.mxu0 0
        %427 = vmatpush1.bf16.msra.mxu0 %v406
        %428 = vmatprep.subr.bf16.mxu0 0
        %429 = vmatpush1.bf16.msra.mxu0 %v407
        %430 = vmatprep.subr.bf16.mxu0 0
        %431 = vmatpush1.bf16.msra.mxu0 %v408
        %432 = vmatprep.subr.bf16.mxu0 0
        %433 = vmatpush1.bf16.msra.mxu0 %v409
        %434 = vmatprep.subr.bf16.mxu0 0
        %435 = vmatpush1.bf16.msra.mxu0 0
        %436 = vmatprep.subr.bf16.mxu0 0
        %437 = vmatpush1.bf16.msra.mxu0 0
        %438 = vmatprep.subr.bf16.mxu0 0
        %439 = vmatpush1.bf16.msra.mxu0 0
        %440 = vmatprep.subr.bf16.mxu0 0
        %441 = vmatpush1.bf16.msra.mxu0 0
        %442 = vmatprep.subr.bf16.mxu0 0
        %443 = vmatpush1.bf16.msra.mxu0 0
        %444 = vmatprep.subr.bf16.mxu0 0
        %445 = vmatpush1.bf16.msra.mxu0 0
        %446 = vmatprep.subr.bf16.mxu0 0
        %447 = vmatpush1.bf16.msra.mxu0 0
        %448 = vmatprep.subr.bf16.mxu0 0
        %449 = vmatpush1.bf16.msra.mxu0 0
        %450 = vmatprep.mubr.bf16.mxu0 0
        %451 = vmatmul.mubr.bf16.gmra.mrb[0].mxu0 %v346
        %v452 = vpop.f32.mrb[0].mxu0
        %v453 = vadd.f32 %v368, %v452
        %v454 = vpop.f32.mrb[0].mxu0
        %v455 = vpop.f32.mrb[0].mxu0
        %v456 = vadd.f32 %v368, %v455
        %v457 = vpop.f32.mrb[0].mxu0
        %458 = vdwg.mxu0
        %v459 = vld [vmem:[%s298] sm:$0x1]
        %v460 = vld [vmem:[%s298 + $0x1] sm:$0x1]
        %v461 = vpack.c.bf16 %v459, %v459
        %v462 = vpack.c.bf16 %v460, %v460
        %v463 = vld [vmem:[#allocation8] sm:$0xf]
        %v464 = vld [vmem:[#allocation8 + $0x4] sm:$0xf]
        %v465 = vld [vmem:[#allocation8 + $0x8] sm:$0xf]
        %v466 = vld [vmem:[#allocation8 + $0xc] sm:$0xf]
        %v467 = vld [vmem:[#allocation8 + $0x10] sm:$0xf]
        %v468 = vld [vmem:[#allocation8 + $0x14] sm:$0xf]
        %v469 = vld [vmem:[#allocation8 + $0x18] sm:$0xf]
        %v470 = vld [vmem:[#allocation8 + $0x1c] sm:$0xf]
        %v471 = vld [vmem:[#allocation8 + $0x20] sm:$0xf]
        %v472 = vld [vmem:[#allocation8 + $0x24] sm:$0xf]
        %v473 = vld [vmem:[#allocation8 + $0x28] sm:$0xf]
        %v474 = vld [vmem:[#allocation8 + $0x2c] sm:$0xf]
        %v475 = vld [vmem:[#allocation8 + $0x30] sm:$0xf]
        %v476 = vld [vmem:[#allocation8 + $0x34] sm:$0xf]
        %v477 = vld [vmem:[#allocation8 + $0x38] sm:$0xf]
        %v478 = vld [vmem:[#allocation8 + $0x3c] sm:$0xf]
        %v479 = vld [vmem:[%s5] sm:$0x1]
        %v481 = vlaneseq
        %v482 = vshrl.u32 %v481, 7
        %v483 = vsub.s32 0, %v482
        %v484 = vrot.slane %v479, %v483
        %v488 = vunpack.c.l.b16 %v461
        %v489 = vunpack.c.l.b16 %v462
        %v490 = vrot.slane %v489, 7
        %vm491 = vcmask 1041409
        %v492 = vsel %vm491, %v490, %v488
        %v493 = vpack.c.b16 %v492, %v492
        %v511 = vunpack.c.l.b16 %v463
        %v512 = vunpack.c.l.b16 %v464
        %v513 = vunpack.c.l.b16 %v465
        %v514 = vunpack.c.l.b16 %v466
        %v515 = vunpack.c.l.b16 %v467
        %v516 = vunpack.c.l.b16 %v468
        %v517 = vunpack.c.l.b16 %v469
        %v518 = vunpack.c.l.b16 %v470
        %v519 = vunpack.c.l.b16 %v471
        %v520 = vunpack.c.l.b16 %v472
        %v521 = vunpack.c.l.b16 %v473
        %v522 = vunpack.c.l.b16 %v474
        %v523 = vunpack.c.l.b16 %v475
        %v524 = vunpack.c.l.b16 %v476
        %v525 = vunpack.c.l.b16 %v477
        %v526 = vunpack.c.l.b16 %v478
        %v527 = vpack.c.b16 %v512, %v511
        %v528 = vpack.c.b16 %v514, %v513
        %v529 = vpack.c.b16 %v516, %v515
        %v530 = vpack.c.b16 %v518, %v517
        %v531 = vpack.c.b16 %v520, %v519
        %v532 = vpack.c.b16 %v522, %v521
        %v533 = vpack.c.b16 %v524, %v523
        %v534 = vpack.c.b16 %v526, %v525
        %543 = vmatprep.subr.bf16.mxu0 0
        %544 = vmatpush1.bf16.msra.mxu0 %v527
        %545 = vmatprep.subr.bf16.mxu0 0
        %546 = vmatpush1.bf16.msra.mxu0 %v528
        %547 = vmatprep.subr.bf16.mxu0 0
        %548 = vmatpush1.bf16.msra.mxu0 %v529
        %549 = vmatprep.subr.bf16.mxu0 0
        %550 = vmatpush1.bf16.msra.mxu0 %v530
        %551 = vmatprep.subr.bf16.mxu0 0
        %552 = vmatpush1.bf16.msra.mxu0 %v531
        %553 = vmatprep.subr.bf16.mxu0 0
        %554 = vmatpush1.bf16.msra.mxu0 %v532
        %555 = vmatprep.subr.bf16.mxu0 0
        %556 = vmatpush1.bf16.msra.mxu0 %v533
        %557 = vmatprep.subr.bf16.mxu0 0
        %558 = vmatpush1.bf16.msra.mxu0 %v534
        %559 = vmatprep.subr.bf16.mxu0 0
        %560 = vmatpush1.bf16.msra.mxu0 0
        %561 = vmatprep.subr.bf16.mxu0 0
        %562 = vmatpush1.bf16.msra.mxu0 0
        %563 = vmatprep.subr.bf16.mxu0 0
        %564 = vmatpush1.bf16.msra.mxu0 0
        %565 = vmatprep.subr.bf16.mxu0 0
        %566 = vmatpush1.bf16.msra.mxu0 0
        %567 = vmatprep.subr.bf16.mxu0 0
        %568 = vmatpush1.bf16.msra.mxu0 0
        %569 = vmatprep.subr.bf16.mxu0 0
        %570 = vmatpush1.bf16.msra.mxu0 0
        %571 = vmatprep.subr.bf16.mxu0 0
        %572 = vmatpush1.bf16.msra.mxu0 0
        %573 = vmatprep.subr.bf16.mxu0 0
        %574 = vmatpush1.bf16.msra.mxu0 0
        %575 = vmatprep.mubr.bf16.mxu0 0
        %576 = vmatmul.mubr.bf16.gmra.mrb[0].mxu0 %v493
        %v577 = vpop.f32.mrb[0].mxu0
        %v578 = vadd.f32 %v484, %v577
        %v579 = vpop.f32.mrb[0].mxu0
        %v580 = vpop.f32.mrb[0].mxu0
        %v581 = vpop.f32.mrb[0].mxu0
        %582 = vdwg.mxu0
        %v584 = vrot.slane %v453, 7
        %vm586 = vcmask 1040384
        %v587 = vsel %vm586, %v578, %v584
        %v589 = vrot.slane %v578, 1
        %v592 = vrot.slane %v456, 7
        %v594 = vsel %vm586, %v589, %v592
        %595 = vst [vmem:[%s339] sm:$0xff] %v587
        %596 = vst [vmem:[%s339 + $0x8] sm:$0xff] %v594
        %597 = vst [vmem:[%s339 + $0x10] sm:$0x1] %v584
        %598 = vst [vmem:[%s339 + $0x18] sm:$0x1] %v592
        %s599 = sand.u32 %s171, 1
        %s600 = scalar_lea.sflag [#allocation4], %s599
        %s601 = sand.u32 %s171, 1
        %s602 = smul.addr %s601, 32
        %s603 = scalar_lea.vmem [#allocation10], %s602
        // Predicated region
        $region61: #{tpu_custom_call.1} parent=43 // pred_check
          %p604 = pneg %p181
        $region62: #{tpu_custom_call.1} parent=43 // pred_check_branch
          %606 = sbr.rel (%p604) target = $region64
        $region63: #{tpu_custom_call.1} parent=43 // pred_region
          %s607 = smul.u32 2, %s27
          %s609 = ssub.s32 512, 512
          %610 = vsyncadd %s600, %s609
          %s611 = smul.addr %s607, 128
          %s612 = scalar_lea.hbm %s6, %s611
          %s613 = sshll.u32 %s603, 4
          %s614 = int_to_ptr.vmem [resolvable:$true] %s613
          %619 = dma.vmem_to_hbm [thread:$0]  %s614, 512, %s612, %s600, 256, 512, 16
        $region64: #{tpu_custom_call.1} parent=43 // pred_fallthru
          _
      $region44: #{tpu_custom_call.1} parent=5 // pred_fallthru
        _
      %p620 = scmp.le.s32.totalorder 2, %s22
      // Predicated region
      $region65: #{tpu_custom_call.1} parent=5 // pred_check
        %p621 = pneg %p620
      $region66: #{tpu_custom_call.1} parent=5 // pred_check_branch
        %623 = sbr.rel (%p621) target = $region68
      $region67: #{tpu_custom_call.1} parent=5 // pred_region
        %s624 = ssub.s32 %s22, 2
        // Predicated region
        $region69: #{tpu_custom_call.1} parent=67 // pred_check
          %p625 = pneg %p187
        $region70: #{tpu_custom_call.1} parent=67 // pred_check_branch
          %627 = sbr.rel (%p625) target = $region72
        $region71: #{tpu_custom_call.1} parent=67 // pred_region
          %s628 = sand.u32 %s172, 1
          %s629 = scalar_lea.sflag [#allocation4], %s628
          %s630 = sand.u32 %s172, 1
          %s631 = smul.addr %s630, 32
          %s632 = scalar_lea.vmem [#allocation10], %s631
          %633 = dma.done %s629, 512
        $region72: #{tpu_custom_call.1} parent=67 // pred_fallthru
          _
      $region68: #{tpu_custom_call.1} parent=5 // pred_fallthru
        _
    $region6: #{tpu_custom_call.1} parent=1 // loop_footer
      %s26 = sadd.s32 1, %s22
    $region7: #{tpu_custom_call.1} parent=1 // loop_footer_branch
      %21 = sbr.rel target = $region3
    $region8: #{tpu_custom_call.1} parent=1 // loop_exit
      _
    %634 = vsyncpa [#allocation3], 1
    %s635 = scalar_lea.sflag [#allocation3], 1
    %636 = vsyncpa %s635, 1
    %637 = vsyncpa [#allocation6], 1
    %s638 = scalar_lea.sflag [#allocation6], 1
    %639 = vsyncpa %s638, 1
    %640 = vsyncpa [#allocation9], 1
    %641 = vsyncpa [#allocation4], 1
    %s642 = scalar_lea.sflag [#allocation4], 1
    %643 = vsyncpa %s642, 1

</llo_original>
